<compile_context>
chip_gen: v5e
topology: v5e:2x2
jax: 0.10.0
libtpu: 0.0.40
codegen_flags: <defaults>
</compile_context>

<pallas_src>
import functools

import jax
import jax.numpy as jnp
from jax.experimental import pallas as pl
from jax.experimental.pallas import tpu as pltpu

LANES = 128
SUBLANES = 8


def _round_up(x, m):
    return ((x + m - 1) // m) * m


def ptrndnn_kernel(x_ref, slab_ref, out_ref, *, e_dim):
    # x_ref:    (b_tile, S, E)   one tile of sentences
    # slab_ref: (rows, L_pad)    rows[0:E] = folded weight (incl. 1/S), row[E] = bias
    # out_ref:  (b_tile, L_pad)  lane-dense output tile
    x = x_ref[...]
    s = jnp.sum(x, axis=1)                         # (b_tile, E); 1/S folded into W
    w = slab_ref[0:e_dim, :]                       # (E, L_pad) static slice, no copy
    b = slab_ref[e_dim:e_dim + 1, :]               # (1, L_pad)
    y = jnp.dot(s, w, preferred_element_type=jnp.float32) + b
    out_ref[...] = y.astype(out_ref.dtype)


def fold_params(params, seq_len):
    """Fold lin1..hidden2tag (all affine, dropout identity at eval) and the
    1/S mean scale into a single (E, L) weight and (1, L) bias."""
    w_fold, b_fold = params[0]
    for w, b in params[1:]:
        b_fold = b_fold @ w + b
        w_fold = w_fold @ w
    return w_fold / jnp.float32(seq_len), b_fold


def pack_slab(w_fold, b_fold):
    """Pack folded weight + bias into one lane-padded f32 slab (single DMA)."""
    e_dim, l_dim = w_fold.shape
    l_pad = _round_up(l_dim, LANES)
    rows = _round_up(e_dim + 1, SUBLANES)
    slab = jnp.zeros((rows, l_pad), jnp.float32)
    slab = slab.at[:e_dim, :l_dim].set(w_fold)
    slab = slab.at[e_dim, :l_dim].set(b_fold[0])
    return slab


def ptrndnn_forward_batched(sentences, params, *, b_tile=None):
    """sentences: (B, S, E) f32; params: list of (W_t (in,out), b (1,out)).
    Returns (B, L) label scores, one row per sentence."""
    B, S, E = sentences.shape
    L = params[-1][0].shape[1]

    w_fold, b_fold = fold_params(params, S)
    slab = pack_slab(w_fold, b_fold)
    rows, l_pad = slab.shape

    if b_tile is None:
        b_tile = min(128, _round_up(B, SUBLANES))
    b_pad = _round_up(B, b_tile)
    if b_pad != B:
        sentences = jnp.pad(sentences, ((0, b_pad - B), (0, 0), (0, 0)))

    out = pl.pallas_call(
        functools.partial(ptrndnn_kernel, e_dim=E),
        out_shape=jax.ShapeDtypeStruct((b_pad, l_pad), jnp.float32),
        grid=(b_pad // b_tile,),
        in_specs=[
            # one tile of sentences per grid step
            pl.BlockSpec((b_tile, S, E), lambda i: (i, 0, 0)),
            # parameter slab: constant block index -> stays VMEM-resident
            pl.BlockSpec((rows, l_pad), lambda i: (0, 0)),
        ],
        out_specs=pl.BlockSpec((b_tile, l_pad), lambda i: (i, 0)),
        compiler_params=pltpu.CompilerParams(
            dimension_semantics=("parallel",)),
    )(sentences, slab)
    return out[:B, :L]


def ptrndnn_forward(sentence, params):
    """Single-sentence forward matching the PyTorch module: (S, E) -> (1, L)."""
    return ptrndnn_forward_batched(sentence[None], params)


# ---------------------------------------------------------------------------
# Parameter construction (matches torch: xavier_uniform_ weights, default bias)
# ---------------------------------------------------------------------------
def xavier_uniform(key, fan_out, fan_in):
    limit = jnp.sqrt(6.0 / (fan_in + fan_out))
    # PyTorch weight is (out, in); generate that, transpose so kernel does x @ W.
    w = jax.random.uniform(key, (fan_out, fan_in), jnp.float32, -limit, limit)
    return w.T


def linear_bias(key, fan_in, fan_out):
    bound = 1.0 / jnp.sqrt(jnp.float32(fan_in))
    return jax.random.uniform(key, (1, fan_out), jnp.float32, -bound, bound)


def make_params(key, embedding_dim, hidden_dim, num_labels):
    dims = [(embedding_dim, hidden_dim),
            (hidden_dim, hidden_dim),
            (hidden_dim, hidden_dim),
            (hidden_dim, hidden_dim),
            (hidden_dim, hidden_dim),
            (hidden_dim, num_labels)]
    params = []
    for (din, dout) in dims:
        key, kw, kb = jax.random.split(key, 3)
        params.append((xavier_uniform(kw, dout, din), linear_bias(kb, din, dout)))
    return params


if __name__ == "__main__":
    key = jax.random.PRNGKey(0)
    batch, seq_len, embedding_dim, hidden_dim, num_labels = 8, 8, 32, 32, 4

    k_x, k_p = jax.random.split(key)
    sentences = jax.random.normal(k_x, (batch, seq_len, embedding_dim), jnp.float32)
    params = make_params(k_p, embedding_dim, hidden_dim, num_labels)

    # Batched throughput path.
    out_b = ptrndnn_forward_batched(sentences, params)
    out_b = jax.block_until_ready(out_b)
    assert out_b.shape == (batch, num_labels)

    # Single-sentence path matching the original module signature.
    out_1 = ptrndnn_forward(sentences[0], params)
    out_1 = jax.block_until_ready(out_1)
    assert out_1.shape == (1, num_labels)

    # Pure-JAX unfolded reference (original per-layer order).
    ref = jnp.mean(sentences, axis=1)
    for w, b in params:
        ref = ref @ w + b
    assert jnp.allclose(out_b, ref, atol=1e-4, rtol=1e-4), (out_b, ref)
    assert jnp.allclose(out_1, ref[:1], atol=1e-4, rtol=1e-4), (out_1, ref[:1])

    print("KERNEL_OK")
</pallas_src>

<mosaic_0001>
module attributes {stable_mosaic.version = 11 : i64} {
  func.func @ptrndnn_kernel(%arg0: i32, %arg1: memref<8x8x32xf32, #tpu.memory_space<vmem>>, %arg2: memref<40x128xf32, #tpu.memory_space<vmem>>, %arg3: memref<8x128xf32, #tpu.memory_space<vmem>>) attributes {dimension_semantics = [#tpu.dimension_semantics<parallel>], iteration_bounds = array<i64: 1>, scalar_prefetch = 0 : i64, scratch_operands = 0 : i64, tpu.core_type = #tpu.core_type<tc>, window_params = [{transform_indices = @transform_0, window_bounds = array<i64: 8, 8, 32>}, {pipeline_mode = #tpu.pipeline_mode<synchronous>, transform_indices = @transform_1, window_bounds = array<i64: 40, 128>}, {transform_indices = @transform_2, window_bounds = array<i64: 8, 128>}]} {
    %c0 = arith.constant 0 : index
    %c0_0 = arith.constant 0 : index
    %c0_1 = arith.constant 0 : index
    %0 = vector.load %arg1[%c0, %c0_0, %c0_1] : memref<8x8x32xf32, #tpu.memory_space<vmem>>, vector<8x8x32xf32>
    %cst = arith.constant dense<0.000000e+00> : vector<8x32xf32>
    %1 = vector.multi_reduction <add>, %0, %cst [1] : vector<8x8x32xf32> to vector<8x32xf32>
    %c0_2 = arith.constant 0 : index
    %c0_3 = arith.constant 0 : index
    %2 = vector.load %arg2[%c0_2, %c0_3] : memref<40x128xf32, #tpu.memory_space<vmem>>, vector<32x128xf32>
    %c32 = arith.constant 32 : index
    %c0_4 = arith.constant 0 : index
    %3 = vector.load %arg2[%c32, %c0_4] : memref<40x128xf32, #tpu.memory_space<vmem>>, vector<1x128xf32>
    %cst_5 = arith.constant dense<0.000000e+00> : vector<8x128xf32>
    %4 = tpu.matmul %1, %2, %cst_5 {dimension_numbers = #tpu.dot_dimension_numbers<[1], [0], [0], [1], [0, 0, 1, 1], [], []>} : vector<8x32xf32>, vector<32x128xf32>, vector<8x128xf32> -> vector<8x128xf32>
    %5 = vector.broadcast %3 : vector<1x128xf32> to vector<8x128xf32>
    %6 = arith.addf %4, %5 : vector<8x128xf32>
    %c0_6 = arith.constant 0 : index
    %c0_7 = arith.constant 0 : index
    %7 = vector.load %arg3[%c0_6, %c0_7] : memref<8x128xf32, #tpu.memory_space<vmem>>, vector<8x128xf32>
    tpu.vector_store %arg3[%c0_6, %c0_7], %6 {strides = array<i32>} : memref<8x128xf32, #tpu.memory_space<vmem>>, vector<8x128xf32>,
    return
  }
  func.func @transform_0(%arg0: i32) -> (i32, i32, i32) {
    %c0_i32 = arith.constant 0 : i32
    %c0_i32_0 = arith.constant 0 : i32
    %c0_i32_1 = arith.constant 0 : i32
    return %arg0, %c0_i32, %c0_i32_0 : i32, i32, i32
  }
  func.func @transform_1(%arg0: i32) -> (i32, i32) {
    %c0_i32 = arith.constant 0 : i32
    %c0_i32_0 = arith.constant 0 : i32
    %c0_i32_1 = arith.constant 0 : i32
    return %c0_i32, %c0_i32_0 : i32, i32
  }
  func.func @transform_2(%arg0: i32) -> (i32, i32) {
    %c0_i32 = arith.constant 0 : i32
    %c0_i32_0 = arith.constant 0 : i32
    return %arg0, %c0_i32 : i32, i32
  }
}

</mosaic_0001>

<llo_original>
// kernel: tpu_custom_call.1
$region0: #{tpu_custom_call.1}
  #allocation0 [shape = 'u32[]', space=smem, size = 0x4, offset = 0x4, fixed_abs, tag = 'smem constant byte address 0x4 - core index']
  #allocation1 [shape = 'u32[72,128]{1,0:T(1,128)}', space=vmem, size = 0x9000, scoped, tag = 'internal scratch']
  %s0 = inlined_call_operand.hbm [shape: f32[8,8,32], index: 0, kind: input, shape index: {}]
  %s1 = inlined_call_operand.hbm [shape: f32[40,128], index: 1, kind: input, shape index: {}]
  %s2 = inlined_call_operand.hbm [shape: f32[8,128], index: 2, kind: output, shape index: {}]
  %s3 = sld [smem:[#allocation0]]
  $region26: #{tpu_custom_call.1} parent=0
    _
  %s5 = ssub.s32 1, %s3
  %s6 = scalar_select 0, %s5, %s3
  $region1: #{tpu_custom_call.1} parent=0
    #allocation2 [shape = 'u8[32768]{0}', space=vmem, size = 0x8000, scoped, tag = 'input window, operand 0, single buffered']
    #allocation3 [shape = 's32[1]{0}', space=sflag, size = 0x4, scoped, tag = 'scoped memory for tpu_custom_call.1']
    #allocation4 [shape = 's32[1]{0}', space=sflag, size = 0x4, scoped, tag = 'scoped memory for tpu_custom_call.1']
    #allocation5 [shape = 'u8[20480]{0}', space=vmem, size = 0x5000, scoped, tag = 'input window, operand 1, single buffered']
    #allocation6 [shape = 's32[1]{0}', space=sflag, size = 0x4, scoped, tag = 'scoped memory for tpu_custom_call.1']
    #allocation7 [shape = 'u8[4096]{0}', space=vmem, size = 0x1000, scoped, tag = 'output window, operand 0, single buffered']
    %7 = vsyncpa [#allocation3], 0
    %8 = vsyncpa [#allocation6], 0
    %9 = vsyncpa [#allocation4], 0
    // Predicated region
    $region2: #{tpu_custom_call.1} parent=1 // pred_check
      _
    $region3: #{tpu_custom_call.1} parent=1 // pred_check_branch
      %11 = sbr.rel (0) target = $region5
    $region4: #{tpu_custom_call.1} parent=1 // pred_region
      %13 = vsyncadd [#allocation3], 0
      %s14 = sshll.u32 %s0, 4
      %s15 = int_to_ptr.hbm [resolvable:$true] %s14
      %s16 = sshll.u32 [#allocation2], 4
      %s17 = int_to_ptr.vmem [resolvable:$true] %s16
      %22 = dma.hbm_to_vmem [thread:$0]  %s15, 1024, %s17, [#allocation3], 128, 128, 8
    $region5: #{tpu_custom_call.1} parent=1 // pred_fallthru
      _
    // Predicated region
    $region6: #{tpu_custom_call.1} parent=1 // pred_check
      _
    $region7: #{tpu_custom_call.1} parent=1 // pred_check_branch
      %24 = sbr.rel (0) target = $region9
    $region8: #{tpu_custom_call.1} parent=1 // pred_region
      %26 = vsyncadd [#allocation6], 0
      %s27 = sshll.u32 %s1, 4
      %s28 = int_to_ptr.hbm [resolvable:$true] %s27
      %s29 = sshll.u32 [#allocation5], 4
      %s30 = int_to_ptr.vmem [resolvable:$true] %s29
      %35 = dma.hbm_to_vmem [thread:$0]  %s28, 640, %s30, [#allocation6], 128, 128, 8
    $region9: #{tpu_custom_call.1} parent=1 // pred_fallthru
      _
    // Predicated region
    $region10: #{tpu_custom_call.1} parent=1 // pred_check
      _
    $region11: #{tpu_custom_call.1} parent=1 // pred_check_branch
      %37 = sbr.rel (0) target = $region13
    $region12: #{tpu_custom_call.1} parent=1 // pred_region
      %39 = dma.done [#allocation3], 1024
    $region13: #{tpu_custom_call.1} parent=1 // pred_fallthru
      _
    // Predicated region
    $region14: #{tpu_custom_call.1} parent=1 // pred_check
      _
    $region15: #{tpu_custom_call.1} parent=1 // pred_check_branch
      %41 = sbr.rel (0) target = $region17
    $region16: #{tpu_custom_call.1} parent=1 // pred_region
      %43 = dma.done [#allocation6], 640
    $region17: #{tpu_custom_call.1} parent=1 // pred_fallthru
      _
    %v44 = vld [vmem:[#allocation2] sm:$0xff]
    %v45 = vld [vmem:[#allocation2 + $0x8] sm:$0xff]
    %v46 = vld [vmem:[#allocation2 + $0x10] sm:$0xff]
    %v47 = vld [vmem:[#allocation2 + $0x18] sm:$0xff]
    %v48 = vld [vmem:[#allocation2 + $0x20] sm:$0xff]
    %v49 = vld [vmem:[#allocation2 + $0x28] sm:$0xff]
    %v50 = vld [vmem:[#allocation2 + $0x30] sm:$0xff]
    %v51 = vld [vmem:[#allocation2 + $0x38] sm:$0xff]
    %vm52 = vcmask 261120
    %v53 = vsel %vm52, %v44, 0.0
    %v54 = vrot.slane %v53, 4
    %v55 = vadd.f32 %v53, %v54
    %v56 = vrot.slane %v55, 2
    %v57 = vadd.f32 %v55, %v56
    %v58 = vrot.slane %v57, 1
    %v59 = vadd.f32 %v57, %v58
    %v60 = vsel %vm52, %v45, 0.0
    %v61 = vrot.slane %v60, 4
    %v62 = vadd.f32 %v60, %v61
    %v63 = vrot.slane %v62, 2
    %v64 = vadd.f32 %v62, %v63
    %v65 = vrot.slane %v64, 1
    %v66 = vadd.f32 %v64, %v65
    %v67 = vsel %vm52, %v46, 0.0
    %v68 = vrot.slane %v67, 4
    %v69 = vadd.f32 %v67, %v68
    %v70 = vrot.slane %v69, 2
    %v71 = vadd.f32 %v69, %v70
    %v72 = vrot.slane %v71, 1
    %v73 = vadd.f32 %v71, %v72
    %v74 = vsel %vm52, %v47, 0.0
    %v75 = vrot.slane %v74, 4
    %v76 = vadd.f32 %v74, %v75
    %v77 = vrot.slane %v76, 2
    %v78 = vadd.f32 %v76, %v77
    %v79 = vrot.slane %v78, 1
    %v80 = vadd.f32 %v78, %v79
    %v81 = vsel %vm52, %v48, 0.0
    %v82 = vrot.slane %v81, 4
    %v83 = vadd.f32 %v81, %v82
    %v84 = vrot.slane %v83, 2
    %v85 = vadd.f32 %v83, %v84
    %v86 = vrot.slane %v85, 1
    %v87 = vadd.f32 %v85, %v86
    %v88 = vsel %vm52, %v49, 0.0
    %v89 = vrot.slane %v88, 4
    %v90 = vadd.f32 %v88, %v89
    %v91 = vrot.slane %v90, 2
    %v92 = vadd.f32 %v90, %v91
    %v93 = vrot.slane %v92, 1
    %v94 = vadd.f32 %v92, %v93
    %v95 = vsel %vm52, %v50, 0.0
    %v96 = vrot.slane %v95, 4
    %v97 = vadd.f32 %v95, %v96
    %v98 = vrot.slane %v97, 2
    %v99 = vadd.f32 %v97, %v98
    %v100 = vrot.slane %v99, 1
    %v101 = vadd.f32 %v99, %v100
    %v102 = vsel %vm52, %v51, 0.0
    %v103 = vrot.slane %v102, 4
    %v104 = vadd.f32 %v102, %v103
    %v105 = vrot.slane %v104, 2
    %v106 = vadd.f32 %v104, %v105
    %v107 = vrot.slane %v106, 1
    %v108 = vadd.f32 %v106, %v107
    %v109 = vld [vmem:[#allocation5] sm:$0xff]
    %v110 = vld [vmem:[#allocation5 + $0x8] sm:$0xff]
    %v111 = vld [vmem:[#allocation5 + $0x10] sm:$0xff]
    %v112 = vld [vmem:[#allocation5 + $0x18] sm:$0xff]
    %v113 = vld [vmem:[#allocation5 + $0x20] sm:$0x1]
    %v114 = vperm.slane %v113, 0
    %vm123 = vcmask 1041409
    %v124 = vsel %vm123, %v66, %v59
    %vm125 = vcmask 1042434
    %v126 = vsel %vm125, %v73, %v124
    %vm127 = vcmask 1043459
    %v128 = vsel %vm127, %v80, %v126
    %vm129 = vcmask 1044484
    %v130 = vsel %vm129, %v87, %v128
    %vm131 = vcmask 1045509
    %v132 = vsel %vm131, %v94, %v130
    %vm133 = vcmask 1046534
    %v134 = vsel %vm133, %v101, %v132
    %vm135 = vcmask 1047559
    %v136 = vsel %vm135, %v108, %v134
    %v137 = vsel %vm52, %v136, 0
    %139 = vmatpush.msra.mxu0 0.0
    %140 = vmatpush.msra.mxu0 0.0
    %141 = vmatpush.msra.mxu0 0.0
    %142 = vmatpush.msra.mxu0 0.0
    %143 = vmatpush.msra.mxu0 0.0
    %144 = vmatpush.msra.mxu0 0.0
    %145 = vmatpush.msra.mxu0 0.0
    %146 = vmatpush.msra.mxu0 0.0
    %147 = vmatpush.msra.mxu0 0.0
    %148 = vmatpush.msra.mxu0 0.0
    %149 = vmatpush.msra.mxu0 0.0
    %150 = vmatpush.msra.mxu0 0.0
    %151 = vmatpush.msra.mxu0 %v112
    %152 = vmatpush.msra.mxu0 %v111
    %153 = vmatpush.msra.mxu0 %v110
    %154 = vmatpush.msra.mxu0 %v109
    %155 = vmatmul.f32.gmra.mxu0 %v137
    %v156 = vpop.f32.mrf.mxu0
    %v157 = vadd.f32 %v114, %v156
    %158 = vdwg.mxu0
    %159 = vst [vmem:[#allocation7] sm:$0xff] %v157
    // Predicated region
    $region18: #{tpu_custom_call.1} parent=1 // pred_check
      _
    $region19: #{tpu_custom_call.1} parent=1 // pred_check_branch
      %161 = sbr.rel (0) target = $region21
    $region20: #{tpu_custom_call.1} parent=1 // pred_region
      %163 = vsyncadd [#allocation4], 0
      %s165 = sshll.u32 [#allocation7], 4
      %s166 = int_to_ptr.vmem [resolvable:$true] %s165
      %s167 = sshll.u32 %s2, 4
      %s168 = int_to_ptr.hbm [resolvable:$true] %s167
      %170 = dma.vmem_to_hbm [thread:$0]  %s166, 128, %s168, [#allocation4]
    $region21: #{tpu_custom_call.1} parent=1 // pred_fallthru
      _
    // Predicated region
    $region22: #{tpu_custom_call.1} parent=1 // pred_check
      _
    $region23: #{tpu_custom_call.1} parent=1 // pred_check_branch
      %172 = sbr.rel (0) target = $region25
    $region24: #{tpu_custom_call.1} parent=1 // pred_region
      %174 = dma.done [#allocation4], 128
    $region25: #{tpu_custom_call.1} parent=1 // pred_fallthru
      _
    %175 = vsyncpa [#allocation3], 1
    %176 = vsyncpa [#allocation6], 1
    %177 = vsyncpa [#allocation4], 1

</llo_original>
